<compile_context>
chip_gen: v7x
topology: tpu7x:2x2x1
jax: 0.10.0
libtpu: 0.0.40
codegen_flags: <defaults>
</compile_context>

<pallas_src>
import functools

import jax
import jax.numpy as jnp
import numpy as np
from jax.experimental import pallas as pl
from jax.experimental.pallas import tpu as pltpu


DROPOUT_P = 0.1
# Drop iff bits < threshold  =>  P(drop) = DROPOUT_P over uint32 range.
_DROP_THRESHOLD = np.uint32(round(DROPOUT_P * float(2 ** 32)))
_KEEP_SCALE = 1.0 / (1.0 - DROPOUT_P)


def _round_up(n, m):
    return ((n + m - 1) // m) * m


def _mlp_kernel(*refs, training: bool):
    if training:
        x_ref, w1_ref, b1_ref, w2_ref, b2_ref, bits_ref, o_ref = refs
    else:
        x_ref, w1_ref, b1_ref, w2_ref, b2_ref, o_ref = refs
        bits_ref = None

    # First linear on the MXU: (TM, D_in) @ (D_in, H) -> f32 accumulate.
    h = jnp.dot(x_ref[...], w1_ref[...], preferred_element_type=jnp.float32)
    h = h + b1_ref[...]
    # ReLU (VPU).
    h = jnp.maximum(h, 0.0)

    # Dropout(p=0.1), inverted scaling; single compare + select on raw bits.
    if training:
        keep = bits_ref[...] >= _DROP_THRESHOLD
        h = jnp.where(keep, h * _KEEP_SCALE, 0.0)

    # Second linear: (TM, H) @ (H, D_out) -> f32 accumulate.
    h = h.astype(w2_ref.dtype)
    y = jnp.dot(h, w2_ref[...], preferred_element_type=jnp.float32)
    y = y + b2_ref[...]
    o_ref[...] = y.astype(o_ref.dtype)


def mlp_forward(x, w1, b1, w2, b2, *, training=False, rng_key=None,
                compute_dtype=jnp.float32, out_dtype=None, block_m=256):
    """Fused MLP forward.

    x: (B, D_in); w1: (D_in, H); b1: (H,); w2: (H, D_out); b2: (D_out,).
    Weights are passed pre-transposed relative to PyTorch (in, out) so the
    kernel computes y = x @ W + b directly.
    """
    B, D_in = x.shape
    H = w1.shape[1]
    D_out = w2.shape[1]
    out_dtype = out_dtype if out_dtype is not None else x.dtype

    # Batch tile: sublane-aligned (8 for f32, 16 for bf16), capped at block_m.
    sub = 16 if jnp.dtype(compute_dtype) == jnp.dtype(jnp.bfloat16) else 8
    tm = min(_round_up(block_m, sub), _round_up(B, sub))
    num_blocks = pl.cdiv(B, tm)
    b_pad = num_blocks * tm

    # Cast operands once in the wrapper (halves HBM traffic / VMEM for bf16).
    x_c = x.astype(compute_dtype)
    if b_pad != B:
        x_c = jnp.pad(x_c, ((0, b_pad - B), (0, 0)))
    w1_c = w1.astype(compute_dtype)
    w2_c = w2.astype(compute_dtype)
    b1_2d = b1.reshape(1, H).astype(jnp.float32)
    b2_2d = b2.reshape(1, D_out).astype(jnp.float32)

    args = [x_c, w1_c, b1_2d, w2_c, b2_2d]
    in_specs = [
        pl.BlockSpec((tm, D_in), lambda i: (i, 0)),     # streamed x tile
        pl.BlockSpec((D_in, H), lambda i: (0, 0)),      # resident w1
        pl.BlockSpec((1, H), lambda i: (0, 0)),         # resident b1
        pl.BlockSpec((H, D_out), lambda i: (0, 0)),     # resident w2
        pl.BlockSpec((1, D_out), lambda i: (0, 0)),     # resident b2
    ]

    if training:
        if rng_key is None:
            raise ValueError("training=True requires rng_key")
        # Host-generated raw uint32 bits, one per hidden activation; each
        # batch tile automatically gets an independent mask.
        bits = jax.random.bits(rng_key, (b_pad, H), dtype=jnp.uint32)
        args.append(bits)
        in_specs.append(pl.BlockSpec((tm, H), lambda i: (i, 0)))

    out_specs = pl.BlockSpec((tm, D_out), lambda i: (i, 0))

    # VMEM budget: resident weights + double-buffered streamed tiles.
    itemsize_c = jnp.dtype(compute_dtype).itemsize
    out_itemsize = jnp.dtype(out_dtype).itemsize
    weight_bytes = (w1_c.size + w2_c.size) * itemsize_c + (H + D_out) * 4
    tile_bytes = 2 * (tm * D_in * itemsize_c + tm * D_out * out_itemsize)
    if training:
        tile_bytes += 2 * tm * H * 4
    needed = weight_bytes + tile_bytes + (2 << 20)
    vmem_limit = int(min(64 * 1024 * 1024, max(32 * 1024 * 1024, 2 * needed)))

    flops = 2 * b_pad * (D_in * H + H * D_out)
    bytes_accessed = (b_pad * D_in * itemsize_c
                      + (w1_c.size + w2_c.size) * itemsize_c
                      + (H + D_out) * 4
                      + b_pad * D_out * out_itemsize
                      + (b_pad * H * 4 if training else 0))
    cost = pl.CostEstimate(flops=int(flops), transcendentals=0,
                           bytes_accessed=int(bytes_accessed))

    kernel = functools.partial(_mlp_kernel, training=training)

    out = pl.pallas_call(
        kernel,
        out_shape=jax.ShapeDtypeStruct((b_pad, D_out), out_dtype),
        grid=(num_blocks,),
        in_specs=in_specs,
        out_specs=out_specs,
        compiler_params=pltpu.CompilerParams(
            dimension_semantics=("parallel",),
            vmem_limit_bytes=vmem_limit,
        ),
        cost_estimate=cost,
    )(*args)

    return out[:B]


def _init_params(key, input_dim, hidden_dim, output_dim):
    # Deterministic synthetic weights (PyTorch Linear-like uniform bounds).
    k1, k2, k3, k4 = jax.random.split(key, 4)
    bound1 = 1.0 / (input_dim ** 0.5)
    bound2 = 1.0 / (hidden_dim ** 0.5)
    w1 = jax.random.uniform(k1, (input_dim, hidden_dim), jnp.float32,
                            -bound1, bound1)
    b1 = jax.random.uniform(k2, (hidden_dim,), jnp.float32, -bound1, bound1)
    w2 = jax.random.uniform(k3, (hidden_dim, output_dim), jnp.float32,
                            -bound2, bound2)
    b2 = jax.random.uniform(k4, (output_dim,), jnp.float32, -bound2, bound2)
    return w1, b1, w2, b2


def _reference(x, w1, b1, w2, b2):
    return jnp.maximum(x @ w1 + b1, 0.0) @ w2 + b2


if __name__ == "__main__":
    key = jax.random.PRNGKey(0)
    kx, kp, kd, kx2 = jax.random.split(key, 4)

    input_dim, hidden_dim, output_dim = 16, 4, 128
    w1, b1, w2, b2 = _init_params(kp, input_dim, hidden_dim, output_dim)

    # 1) Eval mode, f32 compute, single tile: verify against JAX reference.
    batch = 8
    x = jax.random.normal(kx, (batch, input_dim), dtype=jnp.float32)
    out = jax.block_until_ready(mlp_forward(x, w1, b1, w2, b2, training=False))
    ref = _reference(x, w1, b1, w2, b2)
    assert out.shape == (batch, output_dim)
    assert jnp.allclose(out, ref, atol=5e-3, rtol=5e-3), "eval mismatch"

    # 2) Larger, non-tile-multiple batch: exercises grid (>1 step) + padding.
    x2 = jax.random.normal(kx2, (600, input_dim), dtype=jnp.float32)
    out2 = jax.block_until_ready(mlp_forward(x2, w1, b1, w2, b2, block_m=256))
    ref2 = _reference(x2, w1, b1, w2, b2)
    assert out2.shape == (600, output_dim)
    assert jnp.allclose(out2, ref2, atol=5e-3, rtol=5e-3), "tiled mismatch"

    # 3) bf16-compute path (MXU-friendly operands, f32 accumulate).
    out_bf16 = jax.block_until_ready(
        mlp_forward(x2, w1, b1, w2, b2, compute_dtype=jnp.bfloat16))
    assert jnp.allclose(out_bf16, ref2, atol=5e-2, rtol=5e-2), "bf16 mismatch"

    # 4) Training mode: inverted dropout from streamed uint32 bits.
    out_tr = jax.block_until_ready(
        mlp_forward(x, w1, b1, w2, b2, training=True, rng_key=kd))
    assert out_tr.shape == (batch, output_dim)
    assert bool(jnp.all(jnp.isfinite(out_tr)))

    print("KERNEL_OK")
</pallas_src>

<mosaic_0001>
module attributes {stable_mosaic.version = 11 : i64} {
  func.func @_mlp_kernel(%arg0: i32, %arg1: memref<8x16xf32, #tpu.memory_space<vmem>>, %arg2: memref<16x4xf32, #tpu.memory_space<vmem>>, %arg3: memref<1x4xf32, #tpu.memory_space<vmem>>, %arg4: memref<4x128xf32, #tpu.memory_space<vmem>>, %arg5: memref<1x128xf32, #tpu.memory_space<vmem>>, %arg6: memref<8x128xf32, #tpu.memory_space<vmem>>) attributes {dimension_semantics = [#tpu.dimension_semantics<parallel>], iteration_bounds = array<i64: 1>, scalar_prefetch = 0 : i64, scratch_operands = 0 : i64, tpu.core_type = #tpu.core_type<tc>, window_params = [{transform_indices = @transform_0, window_bounds = array<i64: 8, 16>}, {pipeline_mode = #tpu.pipeline_mode<synchronous>, transform_indices = @transform_1, window_bounds = array<i64: 16, 4>}, {pipeline_mode = #tpu.pipeline_mode<synchronous>, transform_indices = @transform_2, window_bounds = array<i64: 1, 4>}, {pipeline_mode = #tpu.pipeline_mode<synchronous>, transform_indices = @transform_3, window_bounds = array<i64: 4, 128>}, {pipeline_mode = #tpu.pipeline_mode<synchronous>, transform_indices = @transform_4, window_bounds = array<i64: 1, 128>}, {transform_indices = @transform_5, window_bounds = array<i64: 8, 128>}]} {
    %c0 = arith.constant 0 : index
    %c0_0 = arith.constant 0 : index
    %0 = vector.load %arg1[%c0, %c0_0] : memref<8x16xf32, #tpu.memory_space<vmem>>, vector<8x16xf32>
    %c0_1 = arith.constant 0 : index
    %c0_2 = arith.constant 0 : index
    %1 = vector.load %arg2[%c0_1, %c0_2] : memref<16x4xf32, #tpu.memory_space<vmem>>, vector<16x4xf32>
    %cst = arith.constant dense<0.000000e+00> : vector<8x4xf32>
    %2 = tpu.matmul %0, %1, %cst {dimension_numbers = #tpu.dot_dimension_numbers<[1], [0], [0], [1], [0, 0, 1, 1], [], []>} : vector<8x16xf32>, vector<16x4xf32>, vector<8x4xf32> -> vector<8x4xf32>
    %c0_3 = arith.constant 0 : index
    %c0_4 = arith.constant 0 : index
    %3 = vector.load %arg3[%c0_3, %c0_4] : memref<1x4xf32, #tpu.memory_space<vmem>>, vector<1x4xf32>
    %4 = vector.broadcast %3 : vector<1x4xf32> to vector<8x4xf32>
    %5 = arith.addf %2, %4 : vector<8x4xf32>
    %cst_5 = arith.constant 0.000000e+00 : f32
    %6 = vector.broadcast %cst_5 : f32 to vector<8x4xf32>
    %7 = arith.maximumf %5, %6 : vector<8x4xf32>
    %c0_6 = arith.constant 0 : index
    %c0_7 = arith.constant 0 : index
    %8 = vector.load %arg4[%c0_6, %c0_7] : memref<4x128xf32, #tpu.memory_space<vmem>>, vector<4x128xf32>
    %cst_8 = arith.constant dense<0.000000e+00> : vector<8x128xf32>
    %9 = tpu.matmul %7, %8, %cst_8 {dimension_numbers = #tpu.dot_dimension_numbers<[1], [0], [0], [1], [0, 0, 1, 1], [], []>} : vector<8x4xf32>, vector<4x128xf32>, vector<8x128xf32> -> vector<8x128xf32>
    %c0_9 = arith.constant 0 : index
    %c0_10 = arith.constant 0 : index
    %10 = vector.load %arg5[%c0_9, %c0_10] : memref<1x128xf32, #tpu.memory_space<vmem>>, vector<1x128xf32>
    %11 = vector.broadcast %10 : vector<1x128xf32> to vector<8x128xf32>
    %12 = arith.addf %9, %11 : vector<8x128xf32>
    %c0_11 = arith.constant 0 : index
    %c0_12 = arith.constant 0 : index
    %13 = vector.load %arg6[%c0_11, %c0_12] : memref<8x128xf32, #tpu.memory_space<vmem>>, vector<8x128xf32>
    tpu.vector_store %arg6[%c0_11, %c0_12], %12 {strides = array<i32>} : memref<8x128xf32, #tpu.memory_space<vmem>>, vector<8x128xf32>,
    return
  }
  func.func @transform_0(%arg0: i32) -> (i32, i32) {
    %c0_i32 = arith.constant 0 : i32
    %c0_i32_0 = arith.constant 0 : i32
    return %arg0, %c0_i32 : i32, i32
  }
  func.func @transform_1(%arg0: i32) -> (i32, i32) {
    %c0_i32 = arith.constant 0 : i32
    %c0_i32_0 = arith.constant 0 : i32
    %c0_i32_1 = arith.constant 0 : i32
    return %c0_i32, %c0_i32_0 : i32, i32
  }
  func.func @transform_2(%arg0: i32) -> (i32, i32) {
    %c0_i32 = arith.constant 0 : i32
    %c0_i32_0 = arith.constant 0 : i32
    %c0_i32_1 = arith.constant 0 : i32
    return %c0_i32, %c0_i32_0 : i32, i32
  }
  func.func @transform_3(%arg0: i32) -> (i32, i32) {
    %c0_i32 = arith.constant 0 : i32
    %c0_i32_0 = arith.constant 0 : i32
    %c0_i32_1 = arith.constant 0 : i32
    return %c0_i32, %c0_i32_0 : i32, i32
  }
  func.func @transform_4(%arg0: i32) -> (i32, i32) {
    %c0_i32 = arith.constant 0 : i32
    %c0_i32_0 = arith.constant 0 : i32
    %c0_i32_1 = arith.constant 0 : i32
    return %c0_i32, %c0_i32_0 : i32, i32
  }
  func.func @transform_5(%arg0: i32) -> (i32, i32) {
    %c0_i32 = arith.constant 0 : i32
    %c0_i32_0 = arith.constant 0 : i32
    return %arg0, %c0_i32 : i32, i32
  }
}

</mosaic_0001>

<llo_original>
// kernel: tpu_custom_call.1
$region0: #{tpu_custom_call.1}
  #allocation0 [shape = 'u32[]', space=smem, size = 0x4, offset = 0x4, fixed_abs, tag = 'smem constant byte address 0x4 - core index']
  #allocation1 [shape = 'u32[144,128]{1,0:T(1,128)}', space=vmem, size = 0x12000, scoped, tag = 'internal scratch']
  %s0 = inlined_call_operand.vmem [shape: f32[8,16], index: 0, kind: input, shape index: {}]
  %s1 = inlined_call_operand.vmem [shape: f32[16,4], index: 1, kind: input, shape index: {}]
  %s2 = inlined_call_operand.vmem [shape: f32[1,4], index: 2, kind: input, shape index: {}]
  %s3 = inlined_call_operand.vmem [shape: f32[4,128], index: 3, kind: input, shape index: {}]
  %s4 = inlined_call_operand.vmem [shape: f32[1,128], index: 4, kind: input, shape index: {}]
  %s5 = inlined_call_operand.hbm [shape: f32[8,128], index: 5, kind: output, shape index: {}]
  %s6 = sld [smem:[#allocation0]]
  $region30: #{tpu_custom_call.1} parent=0
    _
  %s8 = ssub.s32 1, %s6
  %s9 = scalar_select 0, %s8, %s6
  $region1: #{tpu_custom_call.1} parent=0
    #allocation2 [shape = 'u8[4096]{0}', space=vmem, size = 0x1000, scoped, tag = 'output window, operand 0, single buffered']
    #allocation3 [shape = 's32[1]{0}', space=sflag, size = 0x4, scoped, tag = 'scoped memory for tpu_custom_call.1']
    %10 = vsyncpa [#allocation3], 0
    // Predicated region
    $region2: #{tpu_custom_call.1} parent=1 // pred_check
      _
    $region3: #{tpu_custom_call.1} parent=1 // pred_check_branch
      %12 = sbr.rel (0) target = $region5
    $region4: #{tpu_custom_call.1} parent=1 // pred_region
      _
    $region5: #{tpu_custom_call.1} parent=1 // pred_fallthru
      _
    // Predicated region
    $region6: #{tpu_custom_call.1} parent=1 // pred_check
      _
    $region7: #{tpu_custom_call.1} parent=1 // pred_check_branch
      %14 = sbr.rel (0) target = $region9
    $region8: #{tpu_custom_call.1} parent=1 // pred_region
      _
    $region9: #{tpu_custom_call.1} parent=1 // pred_fallthru
      _
    // Predicated region
    $region10: #{tpu_custom_call.1} parent=1 // pred_check
      _
    $region11: #{tpu_custom_call.1} parent=1 // pred_check_branch
      %16 = sbr.rel (0) target = $region13
    $region12: #{tpu_custom_call.1} parent=1 // pred_region
      _
    $region13: #{tpu_custom_call.1} parent=1 // pred_fallthru
      _
    // Predicated region
    $region14: #{tpu_custom_call.1} parent=1 // pred_check
      _
    $region15: #{tpu_custom_call.1} parent=1 // pred_check_branch
      %18 = sbr.rel (0) target = $region17
    $region16: #{tpu_custom_call.1} parent=1 // pred_region
      _
    $region17: #{tpu_custom_call.1} parent=1 // pred_fallthru
      _
    // Predicated region
    $region18: #{tpu_custom_call.1} parent=1 // pred_check
      _
    $region19: #{tpu_custom_call.1} parent=1 // pred_check_branch
      %20 = sbr.rel (0) target = $region21
    $region20: #{tpu_custom_call.1} parent=1 // pred_region
      _
    $region21: #{tpu_custom_call.1} parent=1 // pred_fallthru
      _
    %v21 = vld [vmem:[%s0] sm:$0xff]
    %v22 = vld [vmem:[%s1] sm:$0xff]
    %v23 = vld [vmem:[%s1 + $0x8] sm:$0xff]
    %v24 = vld [vmem:[%s2] sm:$0x1]
    %v26 = vlaneseq
    %v27 = vshrl.u32 %v26, 7
    %v28 = vsub.s32 0, %v27
    %v29 = vrot.slane %v24, %v28
    %vm31 = vcmask 130048
    %v33 = vsel %vm31, %v21, 0
    %35 = vmatprep.subr.mxu0 0.0
    %36 = vmatpush1.msra.mxu0 %v22
    %37 = vmatprep.subr.mxu0 0.0
    %38 = vmatpush1.msra.mxu0 %v23
    %39 = vmatprep.subr.mxu0 0.0
    %40 = vmatpush1.msra.mxu0 0.0
    %41 = vmatprep.subr.mxu0 0.0
    %42 = vmatpush1.msra.mxu0 0.0
    %43 = vmatprep.subr.mxu0 0.0
    %44 = vmatpush1.msra.mxu0 0.0
    %45 = vmatprep.subr.mxu0 0.0
    %46 = vmatpush1.msra.mxu0 0.0
    %47 = vmatprep.subr.mxu0 0.0
    %48 = vmatpush1.msra.mxu0 0.0
    %49 = vmatprep.subr.mxu0 0.0
    %50 = vmatpush1.msra.mxu0 0.0
    %51 = vmatprep.subr.mxu0 0.0
    %52 = vmatpush1.msra.mxu0 0.0
    %53 = vmatprep.subr.mxu0 0.0
    %54 = vmatpush1.msra.mxu0 0.0
    %55 = vmatprep.subr.mxu0 0.0
    %56 = vmatpush1.msra.mxu0 0.0
    %57 = vmatprep.subr.mxu0 0.0
    %58 = vmatpush1.msra.mxu0 0.0
    %59 = vmatprep.subr.mxu0 0.0
    %60 = vmatpush1.msra.mxu0 0.0
    %61 = vmatprep.subr.mxu0 0.0
    %62 = vmatpush1.msra.mxu0 0.0
    %63 = vmatprep.subr.mxu0 0.0
    %64 = vmatpush1.msra.mxu0 0.0
    %65 = vmatprep.subr.mxu0 0.0
    %66 = vmatpush1.msra.mxu0 0.0
    %67 = vmatprep.subr.mxu0 0.0
    %68 = vmatpush1.msra.mxu0 0.0
    %69 = vmatprep.subr.mxu0 0.0
    %70 = vmatpush1.msra.mxu0 0.0
    %71 = vmatprep.subr.mxu0 0.0
    %72 = vmatpush1.msra.mxu0 0.0
    %73 = vmatprep.subr.mxu0 0.0
    %74 = vmatpush1.msra.mxu0 0.0
    %75 = vmatprep.subr.mxu0 0.0
    %76 = vmatpush1.msra.mxu0 0.0
    %77 = vmatprep.subr.mxu0 0.0
    %78 = vmatpush1.msra.mxu0 0.0
    %79 = vmatprep.subr.mxu0 0.0
    %80 = vmatpush1.msra.mxu0 0.0
    %81 = vmatprep.subr.mxu0 0.0
    %82 = vmatpush1.msra.mxu0 0.0
    %83 = vmatprep.subr.mxu0 0.0
    %84 = vmatpush1.msra.mxu0 0.0
    %85 = vmatprep.subr.mxu0 0.0
    %86 = vmatpush1.msra.mxu0 0.0
    %87 = vmatprep.subr.mxu0 0.0
    %88 = vmatpush1.msra.mxu0 0.0
    %89 = vmatprep.subr.mxu0 0.0
    %90 = vmatpush1.msra.mxu0 0.0
    %91 = vmatprep.subr.mxu0 0.0
    %92 = vmatpush1.msra.mxu0 0.0
    %93 = vmatprep.subr.mxu0 0.0
    %94 = vmatpush1.msra.mxu0 0.0
    %95 = vmatprep.subr.mxu0 0.0
    %96 = vmatpush1.msra.mxu0 0.0
    %97 = vmatprep.subr.mxu0 0.0
    %98 = vmatpush1.msra.mxu0 0.0
    %99 = vmatprep.mubr.f32.mxu0 0.0
    %100 = vmatmul.mubr.f32.gmra.mrb[0].mxu0 %v33
    %v101 = vpop.f32.mrb[0].mxu0
    %v102 = vadd.f32 %v29, %v101
    %v103 = vpop.f32.mrb[0].mxu0
    %104 = vdwg.mxu0
    %v105 = vmax.f32 %v102, 0.0
    %v106 = vld [vmem:[%s3] sm:$0xf]
    %v107 = vld [vmem:[%s4] sm:$0x1]
    %v109 = vlaneseq
    %v110 = vshrl.u32 %v109, 7
    %v111 = vsub.s32 0, %v110
    %v112 = vrot.slane %v107, %v111
    %vm114 = vcmask 31744
    %v116 = vsel %vm114, %v105, 0
    %vm118 = vcmask 1043456
    %v120 = vsel %vm118, %v106, 0
    %122 = vmatprep.subr.mxu0 0.0
    %123 = vmatpush1.msra.mxu0 %v120
    %124 = vmatprep.subr.mxu0 0.0
    %125 = vmatpush1.msra.mxu0 0.0
    %126 = vmatprep.subr.mxu0 0.0
    %127 = vmatpush1.msra.mxu0 0.0
    %128 = vmatprep.subr.mxu0 0.0
    %129 = vmatpush1.msra.mxu0 0.0
    %130 = vmatprep.subr.mxu0 0.0
    %131 = vmatpush1.msra.mxu0 0.0
    %132 = vmatprep.subr.mxu0 0.0
    %133 = vmatpush1.msra.mxu0 0.0
    %134 = vmatprep.subr.mxu0 0.0
    %135 = vmatpush1.msra.mxu0 0.0
    %136 = vmatprep.subr.mxu0 0.0
    %137 = vmatpush1.msra.mxu0 0.0
    %138 = vmatprep.subr.mxu0 0.0
    %139 = vmatpush1.msra.mxu0 0.0
    %140 = vmatprep.subr.mxu0 0.0
    %141 = vmatpush1.msra.mxu0 0.0
    %142 = vmatprep.subr.mxu0 0.0
    %143 = vmatpush1.msra.mxu0 0.0
    %144 = vmatprep.subr.mxu0 0.0
    %145 = vmatpush1.msra.mxu0 0.0
    %146 = vmatprep.subr.mxu0 0.0
    %147 = vmatpush1.msra.mxu0 0.0
    %148 = vmatprep.subr.mxu0 0.0
    %149 = vmatpush1.msra.mxu0 0.0
    %150 = vmatprep.subr.mxu0 0.0
    %151 = vmatpush1.msra.mxu0 0.0
    %152 = vmatprep.subr.mxu0 0.0
    %153 = vmatpush1.msra.mxu0 0.0
    %154 = vmatprep.subr.mxu0 0.0
    %155 = vmatpush1.msra.mxu0 0.0
    %156 = vmatprep.subr.mxu0 0.0
    %157 = vmatpush1.msra.mxu0 0.0
    %158 = vmatprep.subr.mxu0 0.0
    %159 = vmatpush1.msra.mxu0 0.0
    %160 = vmatprep.subr.mxu0 0.0
    %161 = vmatpush1.msra.mxu0 0.0
    %162 = vmatprep.subr.mxu0 0.0
    %163 = vmatpush1.msra.mxu0 0.0
    %164 = vmatprep.subr.mxu0 0.0
    %165 = vmatpush1.msra.mxu0 0.0
    %166 = vmatprep.subr.mxu0 0.0
    %167 = vmatpush1.msra.mxu0 0.0
    %168 = vmatprep.subr.mxu0 0.0
    %169 = vmatpush1.msra.mxu0 0.0
    %170 = vmatprep.subr.mxu0 0.0
    %171 = vmatpush1.msra.mxu0 0.0
    %172 = vmatprep.subr.mxu0 0.0
    %173 = vmatpush1.msra.mxu0 0.0
    %174 = vmatprep.subr.mxu0 0.0
    %175 = vmatpush1.msra.mxu0 0.0
    %176 = vmatprep.subr.mxu0 0.0
    %177 = vmatpush1.msra.mxu0 0.0
    %178 = vmatprep.subr.mxu0 0.0
    %179 = vmatpush1.msra.mxu0 0.0
    %180 = vmatprep.subr.mxu0 0.0
    %181 = vmatpush1.msra.mxu0 0.0
    %182 = vmatprep.subr.mxu0 0.0
    %183 = vmatpush1.msra.mxu0 0.0
    %184 = vmatprep.subr.mxu0 0.0
    %185 = vmatpush1.msra.mxu0 0.0
    %186 = vmatprep.mubr.f32.mxu0 0.0
    %187 = vmatmul.mubr.f32.gmra.mrb[0].mxu0 %v116
    %v188 = vpop.f32.mrb[0].mxu0
    %v189 = vadd.f32 %v112, %v188
    %v190 = vpop.f32.mrb[0].mxu0
    %191 = vdwg.mxu0
    %192 = vst [vmem:[#allocation2] sm:$0xff] %v189
    // Predicated region
    $region22: #{tpu_custom_call.1} parent=1 // pred_check
      _
    $region23: #{tpu_custom_call.1} parent=1 // pred_check_branch
      %194 = sbr.rel (0) target = $region25
    $region24: #{tpu_custom_call.1} parent=1 // pred_region
      %s196 = ssub.s32 128, 128
      %197 = vsyncadd [#allocation3], %s196
      %s199 = sshll.u32 [#allocation2], 4
      %s200 = int_to_ptr.vmem [resolvable:$true] %s199
      %202 = dma.vmem_to_hbm [thread:$0]  %s200, 128, %s5, [#allocation3]
    $region25: #{tpu_custom_call.1} parent=1 // pred_fallthru
      _
    // Predicated region
    $region26: #{tpu_custom_call.1} parent=1 // pred_check
      _
    $region27: #{tpu_custom_call.1} parent=1 // pred_check_branch
      %204 = sbr.rel (0) target = $region29
    $region28: #{tpu_custom_call.1} parent=1 // pred_region
      %205 = dma.done [#allocation3], 128
    $region29: #{tpu_custom_call.1} parent=1 // pred_fallthru
      _
    %206 = vsyncpa [#allocation3], 1

</llo_original>
